<compile_context>
chip_gen: v7x
topology: tpu7x:2x2x1
jax: 0.10.0
libtpu: 0.0.40
codegen_flags: <defaults>
</compile_context>

<pallas_src>
import numpy as np
import jax
import jax.numpy as jnp
from jax import lax
from jax.experimental import pallas as pl
from jax.experimental.pallas import tpu as pltpu


def _round_up(x, m):
    return ((x + m - 1) // m) * m


def make_bottleneck_kernel(W, L):
    """Per-grid-step kernel. Processes one (C, L) lane tile (B_TILE whole images)."""

    def kernel(x_ref, m_ref, w1_ref, w2_ref, w3_ref,
               b1_ref, b2_ref, b3_ref, relu_ref, out_ref):
        x = x_ref[...]                                              # (4P, L) f32

        # ---- conv1 (1x1, BN scale folded into w1) + bias + relu -> (P, L) ----
        h1 = jnp.dot(w1_ref[...], x.astype(jnp.bfloat16),
                     preferred_element_type=jnp.float32)
        h1 = jnp.maximum(h1 + b1_ref[...], 0.0)

        # ---- conv2 (3x3, stride 1, pad 1): stack 9 rolled+masked copies of h1
        #      into (9P, L) and do ONE fat MXU matmul (K = 9P) ----
        masks = m_ref[...]                                          # (9, 1, L) f32 {0,1}
        taps = []
        for ky in range(3):
            for kx in range(3):
                t = ky * 3 + kx
                off = (ky - 1) * W + (kx - 1)
                if off == 0:
                    shifted = h1
                else:
                    # shifted[:, j] = h1[:, j + off] (circular; wrap/border masked)
                    shifted = pltpu.roll(h1, shift=(-off) % L, axis=1)
                taps.append(shifted * masks[t])                     # (P, L)
        stacked = jnp.concatenate(taps, axis=0)                     # (9P, L) f32
        h2 = jnp.dot(w2_ref[...], stacked.astype(jnp.bfloat16),
                     preferred_element_type=jnp.float32)            # (P, L)
        h2 = jnp.maximum(h2 + b2_ref[...], 0.0)

        # ---- conv3 (1x1) + bias + relu -> (4P, L) ----
        h3 = jnp.dot(w3_ref[...], h2.astype(jnp.bfloat16),
                     preferred_element_type=jnp.float32)
        h3 = jnp.maximum(h3 + b3_ref[...], 0.0)

        # ---- residual add; the module returns BOTH (relu, out) ----
        out = h3 + x
        out_ref[...] = out
        relu_ref[...] = jnp.maximum(out, 0.0)

    return kernel


def _build_masks(H, W, S_pad, b_tile):
    """Per-tap border masks over one lane tile (b_tile images, each S_pad lanes)."""
    S = H * W
    j = np.arange(S_pad)
    yy, xx = j // W, j % W
    in_img = j < S
    m = np.zeros((9, 1, b_tile * S_pad), np.float32)
    for ky in range(3):
        for kx in range(3):
            dy, dx = ky - 1, kx - 1
            v = (in_img & (yy + dy >= 0) & (yy + dy < H)
                 & (xx + dx >= 0) & (xx + dx < W))
            m[ky * 3 + kx, 0, :] = np.tile(v.astype(np.float32), b_tile)
    return jnp.asarray(m)


def bottleneck_forward(x_nchw, w1, w2, w3, s1, b1, s2, b2, s3, b3):
    """x_nchw: (N, 4P, H, W) f32.  w1: (P, 4P), w2: (P, P, 3, 3) OIHW, w3: (4P, P).
    s*/b* are eval-mode (folded) BatchNorm scale/bias per output channel."""
    N, Cin, H, W = x_nchw.shape
    P = w1.shape[0]
    C_out = 4 * P
    assert Cin == C_out, "residual add requires inplanes == planes * expansion"
    # TODO(synk): pad planes host-side if not a multiple of 8.
    assert P % 8 == 0, "planes must be a multiple of 8 (clean sublane tiling)"

    S = H * W
    S_pad = _round_up(S, 128)        # lane-dense blocks -> unmasked vector stores
    # Process several whole images per grid step when spatial is small, keeping the
    # lane extent per step wide (amortizes per-step overhead and weight setup).
    b_tile = max(1, min(N, 1024 // S_pad))
    while N % b_tile:
        b_tile -= 1
    L = b_tile * S_pad
    G = N // b_tile

    # ---- host-side prep: fold BN scales into weights, cast weights to bf16 ----
    w1f = (w1 * s1[:, None]).astype(jnp.bfloat16)                             # (P, 4P)
    w2s = w2 * s2[:, None, None, None]
    w2f = jnp.transpose(w2s, (0, 2, 3, 1)).reshape(P, 9 * P).astype(jnp.bfloat16)
    w3f = (w3 * s3[:, None]).astype(jnp.bfloat16)                             # (4P, P)
    b1c = b1.reshape(P, 1).astype(jnp.float32)
    b2c = b2.reshape(P, 1).astype(jnp.float32)
    b3c = b3.reshape(C_out, 1).astype(jnp.float32)
    masks = _build_masks(H, W, S_pad, b_tile)                                 # (9,1,L)

    # ---- layout: (C, N*S_pad): channels -> sublanes, padded spatial -> lanes ----
    x_flat = x_nchw.reshape(N, Cin, S)
    if S_pad != S:
        x_flat = jnp.pad(x_flat, ((0, 0), (0, 0), (0, S_pad - S)))
    x_cs = jnp.transpose(x_flat, (1, 0, 2)).reshape(Cin, N * S_pad)

    def const(shape):
        return pl.BlockSpec(shape, lambda g: (0,) * len(shape))

    grid_spec = pltpu.PrefetchScalarGridSpec(
        num_scalar_prefetch=0,
        grid=(G,),
        in_specs=[
            pl.BlockSpec((Cin, L), lambda g: (0, g)),        # x lane tile
            const((9, 1, L)),                                # border masks
            const((P, Cin)),                                 # w1 (scale-folded, bf16)
            const((P, 9 * P)),                               # w2 tap-stacked (bf16)
            const((C_out, P)),                               # w3 (bf16)
            const((P, 1)), const((P, 1)), const((C_out, 1)), # b1, b2, b3 (f32)
        ],
        out_specs=[
            pl.BlockSpec((C_out, L), lambda g: (0, g)),      # relu
            pl.BlockSpec((C_out, L), lambda g: (0, g)),      # out (pre-relu)
        ],
    )

    relu_cs, out_cs = pl.pallas_call(
        make_bottleneck_kernel(W, L),
        grid_spec=grid_spec,
        out_shape=(
            jax.ShapeDtypeStruct((C_out, N * S_pad), jnp.float32),
            jax.ShapeDtypeStruct((C_out, N * S_pad), jnp.float32),
        ),
        compiler_params=pltpu.CompilerParams(
            # lane-tile (batch) axis is fully independent -> megacore-shardable (v7x)
            dimension_semantics=("parallel",),
            vmem_limit_bytes=32 * 1024 * 1024,
        ),
    )(x_cs, masks, w1f, w2f, w3f, b1c, b2c, b3c)

    def back_to_nchw(a_cs):
        a = a_cs.reshape(C_out, N, S_pad)[:, :, :S]
        return jnp.transpose(a, (1, 0, 2)).reshape(N, C_out, H, W)

    return back_to_nchw(relu_cs), back_to_nchw(out_cs)


def fold_bn(gamma, beta, mean, var, eps=1e-5):
    scale = gamma / jnp.sqrt(var + eps)
    bias = beta - mean * scale
    return scale, bias


def ref_forward(x, w1, w2, w3, s1, b1, s2, b2, s3, b3):
    """Plain-JAX f32 reference (uses lax.conv for the 3x3)."""
    def bnrelu(h, s, b):
        return jnp.maximum(h * s[None, :, None, None] + b[None, :, None, None], 0.0)

    h = jnp.einsum('oi,nihw->nohw', w1, x)
    h = bnrelu(h, s1, b1)
    h = lax.conv_general_dilated(h, w2, window_strides=(1, 1),
                                 padding=((1, 1), (1, 1)),
                                 dimension_numbers=('NCHW', 'OIHW', 'NCHW'))
    h = bnrelu(h, s2, b2)
    h = jnp.einsum('oi,nihw->nohw', w3, h)
    h = bnrelu(h, s3, b3)
    out = h + x
    return jnp.maximum(out, 0.0), out


if __name__ == "__main__":
    # Small shapes consistent with the module: planes=8 -> inplanes = planes*4 = 32.
    N, planes, H, W = 2, 8, 16, 16
    inplanes = planes * 4  # expansion = 4, stride=1, downsample=None

    key = jax.random.PRNGKey(0)
    keys = jax.random.split(key, 8)

    x = jax.random.normal(keys[0], (N, inplanes, H, W), dtype=jnp.float32)

    # Deterministic synthetic parameters (convs have no bias, per the module).
    w1 = 0.1 * jax.random.normal(keys[1], (planes, inplanes), dtype=jnp.float32)
    w2 = 0.1 * jax.random.normal(keys[2], (planes, planes, 3, 3), dtype=jnp.float32)
    w3 = 0.1 * jax.random.normal(keys[3], (planes * 4, planes), dtype=jnp.float32)

    def bn_params(k, c):
        k1, k2, k3, k4 = jax.random.split(k, 4)
        gamma = 1.0 + 0.1 * jax.random.normal(k1, (c,), dtype=jnp.float32)
        beta = 0.1 * jax.random.normal(k2, (c,), dtype=jnp.float32)
        mean = 0.1 * jax.random.normal(k3, (c,), dtype=jnp.float32)
        var = jax.random.uniform(k4, (c,), dtype=jnp.float32, minval=0.5, maxval=1.5)
        return gamma, beta, mean, var

    s1, b1 = fold_bn(*bn_params(keys[4], planes))
    s2, b2 = fold_bn(*bn_params(keys[5], planes))
    s3, b3 = fold_bn(*bn_params(keys[6], planes * 4))

    relu_k, out_k = bottleneck_forward(x, w1, w2, w3, s1, b1, s2, b2, s3, b3)
    jax.block_until_ready((relu_k, out_k))

    relu_r, out_r = ref_forward(x, w1, w2, w3, s1, b1, s2, b2, s3, b3)
    err = max(float(jnp.max(jnp.abs(relu_k - relu_r))),
              float(jnp.max(jnp.abs(out_k - out_r))))
    assert relu_k.shape == (N, inplanes, H, W) and out_k.shape == (N, inplanes, H, W)
    # bf16 MXU matmuls (f32 accumulation) -> loosened tolerance vs pure-f32 reference.
    assert err < 5e-2, f"mismatch vs reference: {err}"

    print("KERNEL_OK")
</pallas_src>

<mosaic_0001>
module attributes {stable_mosaic.version = 11 : i64} {
  func.func @kernel(%arg0: i32, %arg1: memref<32x512xf32, #tpu.memory_space<vmem>>, %arg2: memref<9x1x512xf32, #tpu.memory_space<vmem>>, %arg3: memref<8x32xbf16, #tpu.memory_space<vmem>>, %arg4: memref<8x72xbf16, #tpu.memory_space<vmem>>, %arg5: memref<32x8xbf16, #tpu.memory_space<vmem>>, %arg6: memref<8x1xf32, #tpu.memory_space<vmem>>, %arg7: memref<8x1xf32, #tpu.memory_space<vmem>>, %arg8: memref<32x1xf32, #tpu.memory_space<vmem>>, %arg9: memref<32x512xf32, #tpu.memory_space<vmem>>, %arg10: memref<32x512xf32, #tpu.memory_space<vmem>>) attributes {dimension_semantics = [#tpu.dimension_semantics<parallel>], iteration_bounds = array<i64: 1>, scalar_prefetch = 0 : i64, scratch_operands = 0 : i64, tpu.core_type = #tpu.core_type<tc>, window_params = [{transform_indices = @transform_0, window_bounds = array<i64: 32, 512>}, {pipeline_mode = #tpu.pipeline_mode<synchronous>, transform_indices = @transform_1, window_bounds = array<i64: 9, 1, 512>}, {pipeline_mode = #tpu.pipeline_mode<synchronous>, transform_indices = @transform_2, window_bounds = array<i64: 8, 32>}, {pipeline_mode = #tpu.pipeline_mode<synchronous>, transform_indices = @transform_3, window_bounds = array<i64: 8, 72>}, {pipeline_mode = #tpu.pipeline_mode<synchronous>, transform_indices = @transform_4, window_bounds = array<i64: 32, 8>}, {pipeline_mode = #tpu.pipeline_mode<synchronous>, transform_indices = @transform_5, window_bounds = array<i64: 8, 1>}, {pipeline_mode = #tpu.pipeline_mode<synchronous>, transform_indices = @transform_6, window_bounds = array<i64: 8, 1>}, {pipeline_mode = #tpu.pipeline_mode<synchronous>, transform_indices = @transform_7, window_bounds = array<i64: 32, 1>}, {transform_indices = @transform_8, window_bounds = array<i64: 32, 512>}, {transform_indices = @transform_9, window_bounds = array<i64: 32, 512>}]} {
    %c0 = arith.constant 0 : index
    %c0_0 = arith.constant 0 : index
    %0 = vector.load %arg1[%c0, %c0_0] : memref<32x512xf32, #tpu.memory_space<vmem>>, vector<32x512xf32>
    %c0_1 = arith.constant 0 : index
    %c0_2 = arith.constant 0 : index
    %1 = vector.load %arg3[%c0_1, %c0_2] : memref<8x32xbf16, #tpu.memory_space<vmem>>, vector<8x32xbf16>
    %2 = arith.truncf %0 : vector<32x512xf32> to vector<32x512xbf16>
    %cst = arith.constant dense<0.000000e+00> : vector<8x512xf32>
    %3 = tpu.matmul %1, %2, %cst {dimension_numbers = #tpu.dot_dimension_numbers<[1], [0], [0], [1], [0, 0, 1, 1], [], []>} : vector<8x32xbf16>, vector<32x512xbf16>, vector<8x512xf32> -> vector<8x512xf32>
    %c0_3 = arith.constant 0 : index
    %c0_4 = arith.constant 0 : index
    %4 = vector.load %arg6[%c0_3, %c0_4] : memref<8x1xf32, #tpu.memory_space<vmem>>, vector<8x1xf32>
    %5 = vector.broadcast %4 : vector<8x1xf32> to vector<8x512xf32>
    %6 = arith.addf %3, %5 : vector<8x512xf32>
    %cst_5 = arith.constant 0.000000e+00 : f32
    %7 = vector.broadcast %cst_5 : f32 to vector<8x512xf32>
    %8 = arith.maximumf %6, %7 : vector<8x512xf32>
    %c0_6 = arith.constant 0 : index
    %c0_7 = arith.constant 0 : index
    %c0_8 = arith.constant 0 : index
    %9 = vector.load %arg2[%c0_6, %c0_7, %c0_8] : memref<9x1x512xf32, #tpu.memory_space<vmem>>, vector<9x1x512xf32>
    %c17_i32 = arith.constant 17 : i32
    %10 = tpu.dynamic_rotate %8 by %c17_i32 dim 1 : vector<8x512xf32>, i32 -> vector<8x512xf32>
    %11 = vector.extract_strided_slice %9 {offsets = [0, 0, 0], sizes = [1, 1, 512], strides = [1, 1, 1]} : vector<9x1x512xf32> to vector<1x1x512xf32>
    %12 = vector.shape_cast %11 : vector<1x1x512xf32> to vector<1x512xf32>
    %13 = vector.broadcast %12 : vector<1x512xf32> to vector<8x512xf32>
    %14 = arith.mulf %10, %13 : vector<8x512xf32>
    %c16_i32 = arith.constant 16 : i32
    %15 = tpu.dynamic_rotate %8 by %c16_i32 dim 1 : vector<8x512xf32>, i32 -> vector<8x512xf32>
    %16 = vector.extract_strided_slice %9 {offsets = [1, 0, 0], sizes = [1, 1, 512], strides = [1, 1, 1]} : vector<9x1x512xf32> to vector<1x1x512xf32>
    %17 = vector.shape_cast %16 : vector<1x1x512xf32> to vector<1x512xf32>
    %18 = vector.broadcast %17 : vector<1x512xf32> to vector<8x512xf32>
    %19 = arith.mulf %15, %18 : vector<8x512xf32>
    %c15_i32 = arith.constant 15 : i32
    %20 = tpu.dynamic_rotate %8 by %c15_i32 dim 1 : vector<8x512xf32>, i32 -> vector<8x512xf32>
    %21 = vector.extract_strided_slice %9 {offsets = [2, 0, 0], sizes = [1, 1, 512], strides = [1, 1, 1]} : vector<9x1x512xf32> to vector<1x1x512xf32>
    %22 = vector.shape_cast %21 : vector<1x1x512xf32> to vector<1x512xf32>
    %23 = vector.broadcast %22 : vector<1x512xf32> to vector<8x512xf32>
    %24 = arith.mulf %20, %23 : vector<8x512xf32>
    %c1_i32 = arith.constant 1 : i32
    %25 = tpu.dynamic_rotate %8 by %c1_i32 dim 1 : vector<8x512xf32>, i32 -> vector<8x512xf32>
    %26 = vector.extract_strided_slice %9 {offsets = [3, 0, 0], sizes = [1, 1, 512], strides = [1, 1, 1]} : vector<9x1x512xf32> to vector<1x1x512xf32>
    %27 = vector.shape_cast %26 : vector<1x1x512xf32> to vector<1x512xf32>
    %28 = vector.broadcast %27 : vector<1x512xf32> to vector<8x512xf32>
    %29 = arith.mulf %25, %28 : vector<8x512xf32>
    %30 = vector.extract_strided_slice %9 {offsets = [4, 0, 0], sizes = [1, 1, 512], strides = [1, 1, 1]} : vector<9x1x512xf32> to vector<1x1x512xf32>
    %31 = vector.shape_cast %30 : vector<1x1x512xf32> to vector<1x512xf32>
    %32 = vector.broadcast %31 : vector<1x512xf32> to vector<8x512xf32>
    %33 = arith.mulf %8, %32 : vector<8x512xf32>
    %c511_i32 = arith.constant 511 : i32
    %34 = tpu.dynamic_rotate %8 by %c511_i32 dim 1 : vector<8x512xf32>, i32 -> vector<8x512xf32>
    %35 = vector.extract_strided_slice %9 {offsets = [5, 0, 0], sizes = [1, 1, 512], strides = [1, 1, 1]} : vector<9x1x512xf32> to vector<1x1x512xf32>
    %36 = vector.shape_cast %35 : vector<1x1x512xf32> to vector<1x512xf32>
    %37 = vector.broadcast %36 : vector<1x512xf32> to vector<8x512xf32>
    %38 = arith.mulf %34, %37 : vector<8x512xf32>
    %c497_i32 = arith.constant 497 : i32
    %39 = tpu.dynamic_rotate %8 by %c497_i32 dim 1 : vector<8x512xf32>, i32 -> vector<8x512xf32>
    %40 = vector.extract_strided_slice %9 {offsets = [6, 0, 0], sizes = [1, 1, 512], strides = [1, 1, 1]} : vector<9x1x512xf32> to vector<1x1x512xf32>
    %41 = vector.shape_cast %40 : vector<1x1x512xf32> to vector<1x512xf32>
    %42 = vector.broadcast %41 : vector<1x512xf32> to vector<8x512xf32>
    %43 = arith.mulf %39, %42 : vector<8x512xf32>
    %c496_i32 = arith.constant 496 : i32
    %44 = tpu.dynamic_rotate %8 by %c496_i32 dim 1 : vector<8x512xf32>, i32 -> vector<8x512xf32>
    %45 = vector.extract_strided_slice %9 {offsets = [7, 0, 0], sizes = [1, 1, 512], strides = [1, 1, 1]} : vector<9x1x512xf32> to vector<1x1x512xf32>
    %46 = vector.shape_cast %45 : vector<1x1x512xf32> to vector<1x512xf32>
    %47 = vector.broadcast %46 : vector<1x512xf32> to vector<8x512xf32>
    %48 = arith.mulf %44, %47 : vector<8x512xf32>
    %c495_i32 = arith.constant 495 : i32
    %49 = tpu.dynamic_rotate %8 by %c495_i32 dim 1 : vector<8x512xf32>, i32 -> vector<8x512xf32>
    %50 = vector.extract_strided_slice %9 {offsets = [8, 0, 0], sizes = [1, 1, 512], strides = [1, 1, 1]} : vector<9x1x512xf32> to vector<1x1x512xf32>
    %51 = vector.shape_cast %50 : vector<1x1x512xf32> to vector<1x512xf32>
    %52 = vector.broadcast %51 : vector<1x512xf32> to vector<8x512xf32>
    %53 = arith.mulf %49, %52 : vector<8x512xf32>
    %54 = tpu.concatenate %14, %19, %24, %29, %33, %38, %43, %48, %53 in 0 : vector<8x512xf32>, vector<8x512xf32>, vector<8x512xf32>, vector<8x512xf32>, vector<8x512xf32>, vector<8x512xf32>, vector<8x512xf32>, vector<8x512xf32>, vector<8x512xf32> -> vector<72x512xf32>
    %c0_9 = arith.constant 0 : index
    %c0_10 = arith.constant 0 : index
    %55 = vector.load %arg4[%c0_9, %c0_10] : memref<8x72xbf16, #tpu.memory_space<vmem>>, vector<8x72xbf16>
    %56 = arith.truncf %54 : vector<72x512xf32> to vector<72x512xbf16>
    %cst_11 = arith.constant dense<0.000000e+00> : vector<8x512xf32>
    %57 = tpu.matmul %55, %56, %cst_11 {dimension_numbers = #tpu.dot_dimension_numbers<[1], [0], [0], [1], [0, 0, 1, 1], [], []>} : vector<8x72xbf16>, vector<72x512xbf16>, vector<8x512xf32> -> vector<8x512xf32>
    %c0_12 = arith.constant 0 : index
    %c0_13 = arith.constant 0 : index
    %58 = vector.load %arg7[%c0_12, %c0_13] : memref<8x1xf32, #tpu.memory_space<vmem>>, vector<8x1xf32>
    %59 = vector.broadcast %58 : vector<8x1xf32> to vector<8x512xf32>
    %60 = arith.addf %57, %59 : vector<8x512xf32>
    %cst_14 = arith.constant 0.000000e+00 : f32
    %61 = vector.broadcast %cst_14 : f32 to vector<8x512xf32>
    %62 = arith.maximumf %60, %61 : vector<8x512xf32>
    %c0_15 = arith.constant 0 : index
    %c0_16 = arith.constant 0 : index
    %63 = vector.load %arg5[%c0_15, %c0_16] : memref<32x8xbf16, #tpu.memory_space<vmem>>, vector<32x8xbf16>
    %64 = arith.truncf %62 : vector<8x512xf32> to vector<8x512xbf16>
    %cst_17 = arith.constant dense<0.000000e+00> : vector<32x512xf32>
    %65 = tpu.matmul %63, %64, %cst_17 {dimension_numbers = #tpu.dot_dimension_numbers<[1], [0], [0], [1], [0, 0, 1, 1], [], []>} : vector<32x8xbf16>, vector<8x512xbf16>, vector<32x512xf32> -> vector<32x512xf32>
    %c0_18 = arith.constant 0 : index
    %c0_19 = arith.constant 0 : index
    %66 = vector.load %arg8[%c0_18, %c0_19] : memref<32x1xf32, #tpu.memory_space<vmem>>, vector<32x1xf32>
    %67 = vector.broadcast %66 : vector<32x1xf32> to vector<32x512xf32>
    %68 = arith.addf %65, %67 : vector<32x512xf32>
    %cst_20 = arith.constant 0.000000e+00 : f32
    %69 = vector.broadcast %cst_20 : f32 to vector<32x512xf32>
    %70 = arith.maximumf %68, %69 : vector<32x512xf32>
    %71 = arith.addf %70, %0 : vector<32x512xf32>
    %c0_21 = arith.constant 0 : index
    %c0_22 = arith.constant 0 : index
    %72 = vector.load %arg10[%c0_21, %c0_22] : memref<32x512xf32, #tpu.memory_space<vmem>>, vector<32x512xf32>
    tpu.vector_store %arg10[%c0_21, %c0_22], %71 {strides = array<i32>} : memref<32x512xf32, #tpu.memory_space<vmem>>, vector<32x512xf32>,
    %cst_23 = arith.constant 0.000000e+00 : f32
    %73 = vector.broadcast %cst_23 : f32 to vector<32x512xf32>
    %74 = arith.maximumf %71, %73 : vector<32x512xf32>
    %c0_24 = arith.constant 0 : index
    %c0_25 = arith.constant 0 : index
    %75 = vector.load %arg9[%c0_24, %c0_25] : memref<32x512xf32, #tpu.memory_space<vmem>>, vector<32x512xf32>
    tpu.vector_store %arg9[%c0_24, %c0_25], %74 {strides = array<i32>} : memref<32x512xf32, #tpu.memory_space<vmem>>, vector<32x512xf32>,
    return
  }
  func.func @transform_0(%arg0: i32) -> (i32, i32) {
    %c0_i32 = arith.constant 0 : i32
    %c0_i32_0 = arith.constant 0 : i32
    return %c0_i32, %arg0 : i32, i32
  }
  func.func @transform_1(%arg0: i32) -> (i32, i32, i32) {
    %c0_i32 = arith.constant 0 : i32
    %c0_i32_0 = arith.constant 0 : i32
    %c0_i32_1 = arith.constant 0 : i32
    %c0_i32_2 = arith.constant 0 : i32
    return %c0_i32, %c0_i32_0, %c0_i32_1 : i32, i32, i32
  }
  func.func @transform_2(%arg0: i32) -> (i32, i32) {
    %c0_i32 = arith.constant 0 : i32
    %c0_i32_0 = arith.constant 0 : i32
    %c0_i32_1 = arith.constant 0 : i32
    return %c0_i32, %c0_i32_0 : i32, i32
  }
  func.func @transform_3(%arg0: i32) -> (i32, i32) {
    %c0_i32 = arith.constant 0 : i32
    %c0_i32_0 = arith.constant 0 : i32
    %c0_i32_1 = arith.constant 0 : i32
    return %c0_i32, %c0_i32_0 : i32, i32
  }
  func.func @transform_4(%arg0: i32) -> (i32, i32) {
    %c0_i32 = arith.constant 0 : i32
    %c0_i32_0 = arith.constant 0 : i32
    %c0_i32_1 = arith.constant 0 : i32
    return %c0_i32, %c0_i32_0 : i32, i32
  }
  func.func @transform_5(%arg0: i32) -> (i32, i32) {
    %c0_i32 = arith.constant 0 : i32
    %c0_i32_0 = arith.constant 0 : i32
    %c0_i32_1 = arith.constant 0 : i32
    return %c0_i32, %c0_i32_0 : i32, i32
  }
  func.func @transform_6(%arg0: i32) -> (i32, i32) {
    %c0_i32 = arith.constant 0 : i32
    %c0_i32_0 = arith.constant 0 : i32
    %c0_i32_1 = arith.constant 0 : i32
    return %c0_i32, %c0_i32_0 : i32, i32
  }
  func.func @transform_7(%arg0: i32) -> (i32, i32) {
    %c0_i32 = arith.constant 0 : i32
    %c0_i32_0 = arith.constant 0 : i32
    %c0_i32_1 = arith.constant 0 : i32
    return %c0_i32, %c0_i32_0 : i32, i32
  }
  func.func @transform_8(%arg0: i32) -> (i32, i32) {
    %c0_i32 = arith.constant 0 : i32
    %c0_i32_0 = arith.constant 0 : i32
    return %c0_i32, %arg0 : i32, i32
  }
  func.func @transform_9(%arg0: i32) -> (i32, i32) {
    %c0_i32 = arith.constant 0 : i32
    %c0_i32_0 = arith.constant 0 : i32
    return %c0_i32, %arg0 : i32, i32
  }
}

</mosaic_0001>

<llo_original>
// kernel: tpu_custom_call.1
$region0: #{tpu_custom_call.1}
  #allocation0 [shape = 'u32[]', space=smem, size = 0x4, offset = 0x4, fixed_abs, tag = 'smem constant byte address 0x4 - core index']
  #allocation1 [shape = 'u32[144,128]{1,0:T(1,128)}', space=vmem, size = 0x12000, scoped, tag = 'internal scratch']
  %s0 = inlined_call_operand.hbm [shape: f32[32,512], index: 0, kind: input, shape index: {}]
  %s1 = inlined_call_operand.vmem [shape: f32[9,1,512], index: 1, kind: input, shape index: {}]
  %s2 = inlined_call_operand.vmem [shape: bf16[8,32], index: 2, kind: input, shape index: {}]
  %s3 = inlined_call_operand.vmem [shape: bf16[8,72], index: 3, kind: input, shape index: {}]
  %s4 = inlined_call_operand.vmem [shape: bf16[32,8], index: 4, kind: input, shape index: {}]
  %s5 = inlined_call_operand.vmem [shape: f32[8,1], index: 5, kind: input, shape index: {}]
  %s6 = inlined_call_operand.vmem [shape: f32[8,1], index: 6, kind: input, shape index: {}]
  %s7 = inlined_call_operand.vmem [shape: f32[32,1], index: 7, kind: input, shape index: {}]
  %s8 = inlined_call_operand.hbm [shape: f32[32,512], index: 8, kind: output, shape index: {0}]
  %s9 = inlined_call_operand.hbm [shape: f32[32,512], index: 9, kind: output, shape index: {1}]
  %10 = xla_tuple %s8, %s9
  %s11 = sld [smem:[#allocation0]]
  $region54: #{tpu_custom_call.1} parent=0
    _
  %s13 = ssub.s32 1, %s11
  %s14 = scalar_select 0, %s13, %s11
  $region1: #{tpu_custom_call.1} parent=0
    #allocation2 [shape = 'u8[65536]{0}', space=vmem, size = 0x10000, scoped, tag = 'input window, operand 0, single buffered']
    #allocation3 [shape = 's32[1]{0}', space=sflag, size = 0x4, scoped, tag = 'scoped memory for tpu_custom_call.1']
    #allocation4 [shape = 's32[1]{0}', space=sflag, size = 0x4, scoped, tag = 'scoped memory for tpu_custom_call.1']
    #allocation5 [shape = 'u8[65536]{0}', space=vmem, size = 0x10000, scoped, tag = 'output window, operand 0, single buffered']
    #allocation6 [shape = 'u8[65536]{0}', space=vmem, size = 0x10000, scoped, tag = 'output window, operand 1, single buffered']
    #allocation7 [shape = 's32[1]{0}', space=sflag, size = 0x4, scoped, tag = 'scoped memory for tpu_custom_call.1']
    %15 = vsyncpa [#allocation3], 0
    %16 = vsyncpa [#allocation4], 0
    %17 = vsyncpa [#allocation7], 0
    // Predicated region
    $region2: #{tpu_custom_call.1} parent=1 // pred_check
      _
    $region3: #{tpu_custom_call.1} parent=1 // pred_check_branch
      %19 = sbr.rel (0) target = $region5
    $region4: #{tpu_custom_call.1} parent=1 // pred_region
      %s21 = ssub.s32 2048, 2048
      %22 = vsyncadd [#allocation3], %s21
      %s23 = sshll.u32 [#allocation2], 4
      %s24 = int_to_ptr.vmem [resolvable:$true] %s23
      %29 = dma.hbm_to_vmem [thread:$0]  %s0, 2048, %s24, [#allocation3], 512, 512, 32
    $region5: #{tpu_custom_call.1} parent=1 // pred_fallthru
      _
    // Predicated region
    $region6: #{tpu_custom_call.1} parent=1 // pred_check
      _
    $region7: #{tpu_custom_call.1} parent=1 // pred_check_branch
      %31 = sbr.rel (0) target = $region9
    $region8: #{tpu_custom_call.1} parent=1 // pred_region
      _
    $region9: #{tpu_custom_call.1} parent=1 // pred_fallthru
      _
    // Predicated region
    $region10: #{tpu_custom_call.1} parent=1 // pred_check
      _
    $region11: #{tpu_custom_call.1} parent=1 // pred_check_branch
      %33 = sbr.rel (0) target = $region13
    $region12: #{tpu_custom_call.1} parent=1 // pred_region
      _
    $region13: #{tpu_custom_call.1} parent=1 // pred_fallthru
      _
    // Predicated region
    $region14: #{tpu_custom_call.1} parent=1 // pred_check
      _
    $region15: #{tpu_custom_call.1} parent=1 // pred_check_branch
      %35 = sbr.rel (0) target = $region17
    $region16: #{tpu_custom_call.1} parent=1 // pred_region
      _
    $region17: #{tpu_custom_call.1} parent=1 // pred_fallthru
      _
    // Predicated region
    $region18: #{tpu_custom_call.1} parent=1 // pred_check
      _
    $region19: #{tpu_custom_call.1} parent=1 // pred_check_branch
      %37 = sbr.rel (0) target = $region21
    $region20: #{tpu_custom_call.1} parent=1 // pred_region
      _
    $region21: #{tpu_custom_call.1} parent=1 // pred_fallthru
      _
    // Predicated region
    $region22: #{tpu_custom_call.1} parent=1 // pred_check
      _
    $region23: #{tpu_custom_call.1} parent=1 // pred_check_branch
      %39 = sbr.rel (0) target = $region25
    $region24: #{tpu_custom_call.1} parent=1 // pred_region
      _
    $region25: #{tpu_custom_call.1} parent=1 // pred_fallthru
      _
    // Predicated region
    $region26: #{tpu_custom_call.1} parent=1 // pred_check
      _
    $region27: #{tpu_custom_call.1} parent=1 // pred_check_branch
      %41 = sbr.rel (0) target = $region29
    $region28: #{tpu_custom_call.1} parent=1 // pred_region
      _
    $region29: #{tpu_custom_call.1} parent=1 // pred_fallthru
      _
    // Predicated region
    $region30: #{tpu_custom_call.1} parent=1 // pred_check
      _
    $region31: #{tpu_custom_call.1} parent=1 // pred_check_branch
      %43 = sbr.rel (0) target = $region33
    $region32: #{tpu_custom_call.1} parent=1 // pred_region
      _
    $region33: #{tpu_custom_call.1} parent=1 // pred_fallthru
      _
    // Predicated region
    $region34: #{tpu_custom_call.1} parent=1 // pred_check
      _
    $region35: #{tpu_custom_call.1} parent=1 // pred_check_branch
      %45 = sbr.rel (0) target = $region37
    $region36: #{tpu_custom_call.1} parent=1 // pred_region
      %46 = dma.done [#allocation3], 2048
    $region37: #{tpu_custom_call.1} parent=1 // pred_fallthru
      _
    %v48 = vld [vmem:[#allocation2] sm:$0xff]
    %v49 = vld [vmem:[#allocation2 + $0x8] sm:$0xff]
    %v50 = vld [vmem:[#allocation2 + $0x10] sm:$0xff]
    %v51 = vld [vmem:[#allocation2 + $0x18] sm:$0xff]
    %v52 = vld [vmem:[#allocation2 + $0x20] sm:$0xff]
    %v53 = vld [vmem:[#allocation2 + $0x28] sm:$0xff]
    %v54 = vld [vmem:[#allocation2 + $0x30] sm:$0xff]
    %v55 = vld [vmem:[#allocation2 + $0x38] sm:$0xff]
    %v56 = vld [vmem:[#allocation2 + $0x40] sm:$0xff]
    %v57 = vld [vmem:[#allocation2 + $0x48] sm:$0xff]
    %v58 = vld [vmem:[#allocation2 + $0x50] sm:$0xff]
    %v59 = vld [vmem:[#allocation2 + $0x58] sm:$0xff]
    %v60 = vld [vmem:[#allocation2 + $0x60] sm:$0xff]
    %v61 = vld [vmem:[#allocation2 + $0x68] sm:$0xff]
    %v62 = vld [vmem:[#allocation2 + $0x70] sm:$0xff]
    %v63 = vld [vmem:[#allocation2 + $0x78] sm:$0xff]
    %v64 = vld [vmem:[%s2] sm:$0xf]
    %v65 = vpack.c.bf16 %v52, %v48
    %v66 = vpack.c.bf16 %v53, %v49
    %v67 = vpack.c.bf16 %v54, %v50
    %v68 = vpack.c.bf16 %v55, %v51
    %v69 = vpack.c.bf16 %v60, %v56
    %v70 = vpack.c.bf16 %v61, %v57
    %v71 = vpack.c.bf16 %v62, %v58
    %v72 = vpack.c.bf16 %v63, %v59
    %v73 = vld [vmem:[%s5] sm:$0xff]
    %75 = vset.pattern.permute.xlu0 0
    %76 = vperm.xlu0 %75, %v73
    %v77 = vpop.permute.xlu0 %76
    %vm79 = vcmask 261120
    %v81 = vsel %vm79, %v64, 0
    %83 = vmatprep.subr.bf16.mxu0 %v66
    %84 = vmatpush1.bf16.msra.mxu0 %v65
    %85 = vmatprep.subr.bf16.mxu0 %v70
    %86 = vmatpush1.bf16.msra.mxu0 %v69
    %87 = vmatprep.subr.bf16.mxu0 0
    %88 = vmatpush1.bf16.msra.mxu0 0
    %89 = vmatprep.subr.bf16.mxu0 0
    %90 = vmatpush1.bf16.msra.mxu0 0
    %91 = vmatprep.subr.bf16.mxu0 0
    %92 = vmatpush1.bf16.msra.mxu0 0
    %93 = vmatprep.subr.bf16.mxu0 0
    %94 = vmatpush1.bf16.msra.mxu0 0
    %95 = vmatprep.subr.bf16.mxu0 0
    %96 = vmatpush1.bf16.msra.mxu0 0
    %97 = vmatprep.subr.bf16.mxu0 0
    %98 = vmatpush1.bf16.msra.mxu0 0
    %99 = vmatprep.subr.bf16.mxu0 0
    %100 = vmatpush1.bf16.msra.mxu0 0
    %101 = vmatprep.subr.bf16.mxu0 0
    %102 = vmatpush1.bf16.msra.mxu0 0
    %103 = vmatprep.subr.bf16.mxu0 0
    %104 = vmatpush1.bf16.msra.mxu0 0
    %105 = vmatprep.subr.bf16.mxu0 0
    %106 = vmatpush1.bf16.msra.mxu0 0
    %107 = vmatprep.subr.bf16.mxu0 0
    %108 = vmatpush1.bf16.msra.mxu0 0
    %109 = vmatprep.subr.bf16.mxu0 0
    %110 = vmatpush1.bf16.msra.mxu0 0
    %111 = vmatprep.subr.bf16.mxu0 0
    %112 = vmatpush1.bf16.msra.mxu0 0
    %113 = vmatprep.subr.bf16.mxu0 0
    %114 = vmatpush1.bf16.msra.mxu0 0
    %115 = vmatprep.mubr.bf16.mxu0 0
    %116 = vmatmul.mubr.bf16.gmra.mrb[0].mxu0 %v81
    %v117 = vpop.f32.mrb[0].mxu0
    %v118 = vadd.f32 %v77, %v117
    %v119 = vpop.f32.mrb[0].mxu0
    %v120 = vadd.f32 %v77, %v119
    %v121 = vpop.f32.mrb[0].mxu0
    %v122 = vpop.f32.mrb[0].mxu0
    %123 = vdwg.mxu0
    %124 = vmatprep.subr.bf16.mxu0 %v68
    %125 = vmatpush1.bf16.msra.mxu0 %v67
    %126 = vmatprep.subr.bf16.mxu0 %v72
    %127 = vmatpush1.bf16.msra.mxu0 %v71
    %128 = vmatprep.subr.bf16.mxu0 0
    %129 = vmatpush1.bf16.msra.mxu0 0
    %130 = vmatprep.subr.bf16.mxu0 0
    %131 = vmatpush1.bf16.msra.mxu0 0
    %132 = vmatprep.subr.bf16.mxu0 0
    %133 = vmatpush1.bf16.msra.mxu0 0
    %134 = vmatprep.subr.bf16.mxu0 0
    %135 = vmatpush1.bf16.msra.mxu0 0
    %136 = vmatprep.subr.bf16.mxu0 0
    %137 = vmatpush1.bf16.msra.mxu0 0
    %138 = vmatprep.subr.bf16.mxu0 0
    %139 = vmatpush1.bf16.msra.mxu0 0
    %140 = vmatprep.subr.bf16.mxu0 0
    %141 = vmatpush1.bf16.msra.mxu0 0
    %142 = vmatprep.subr.bf16.mxu0 0
    %143 = vmatpush1.bf16.msra.mxu0 0
    %144 = vmatprep.subr.bf16.mxu0 0
    %145 = vmatpush1.bf16.msra.mxu0 0
    %146 = vmatprep.subr.bf16.mxu0 0
    %147 = vmatpush1.bf16.msra.mxu0 0
    %148 = vmatprep.subr.bf16.mxu0 0
    %149 = vmatpush1.bf16.msra.mxu0 0
    %150 = vmatprep.subr.bf16.mxu0 0
    %151 = vmatpush1.bf16.msra.mxu0 0
    %152 = vmatprep.subr.bf16.mxu0 0
    %153 = vmatpush1.bf16.msra.mxu0 0
    %154 = vmatprep.subr.bf16.mxu0 0
    %155 = vmatpush1.bf16.msra.mxu0 0
    %156 = vmatprep.mubr.bf16.mxu0 0
    %157 = vmatmul.mubr.bf16.gmra.mrb[0].mxu0 %v81
    %v158 = vpop.f32.mrb[0].mxu0
    %v159 = vadd.f32 %v77, %v158
    %v160 = vpop.f32.mrb[0].mxu0
    %v161 = vadd.f32 %v77, %v160
    %v162 = vpop.f32.mrb[0].mxu0
    %v163 = vpop.f32.mrb[0].mxu0
    %164 = vdwg.mxu0
    %v165 = vmax.f32 %v118, 0.0
    %v166 = vmax.f32 %v120, 0.0
    %v167 = vmax.f32 %v159, 0.0
    %v168 = vmax.f32 %v161, 0.0
    %v169 = vld [vmem:[%s1] sm:$0xf]
    %v170 = vld [vmem:[%s1 + $0x4] sm:$0xf]
    %v171 = vld [vmem:[%s1 + $0x8] sm:$0xf]
    %v172 = vld [vmem:[%s1 + $0xc] sm:$0xf]
    %v173 = vld [vmem:[%s1 + $0x10] sm:$0xf]
    %v174 = vld [vmem:[%s1 + $0x14] sm:$0xf]
    %v175 = vld [vmem:[%s1 + $0x18] sm:$0xf]
    %v176 = vld [vmem:[%s1 + $0x1c] sm:$0xf]
    %v177 = vld [vmem:[%s1 + $0x20] sm:$0xf]
    %178 = vrot.lane.b32.xlu0 %v165, 17
    %v179 = vpop.permute.xlu0 %178
    %180 = vrot.lane.b32.xlu0 %v166, 17
    %v181 = vpop.permute.xlu0 %180
    %182 = vrot.lane.b32.xlu0 %v167, 17
    %v183 = vpop.permute.xlu0 %182
    %184 = vrot.lane.b32.xlu0 %v168, 17
    %v185 = vpop.permute.xlu0 %184
    %v186 = vlaneseq
    %v187 = vand.u32 %v186, 127
    %vm188 = vcmp.lt.s32.totalorder %v187, 17
    %v189 = vsel %vm188, %v183, %v185
    %v190 = vsel %vm188, %v181, %v183
    %v191 = vsel %vm188, %v179, %v181
    %v192 = vsel %vm188, %v185, %v179
    %v194 = vlaneseq
    %v195 = vshrl.u32 %v194, 7
    %v196 = vsub.s32 0, %v195
    %v197 = vrot.slane %v169, %v196
    %v198 = vlaneseq
    %v199 = vshrl.u32 %v198, 7
    %v200 = vsub.s32 1, %v199
    %v201 = vrot.slane %v169, %v200
    %v202 = vlaneseq
    %v203 = vshrl.u32 %v202, 7
    %v204 = vsub.s32 2, %v203
    %v205 = vrot.slane %v169, %v204
    %v206 = vlaneseq
    %v207 = vshrl.u32 %v206, 7
    %v208 = vsub.s32 3, %v207
    %v209 = vrot.slane %v169, %v208
    %v214 = vmul.f32 %v192, %v197
    %v215 = vmul.f32 %v191, %v201
    %v216 = vmul.f32 %v190, %v205
    %v217 = vmul.f32 %v189, %v209
    %218 = vrot.lane.b32.xlu0 %v165, 16
    %v219 = vpop.permute.xlu0 %218
    %220 = vrot.lane.b32.xlu0 %v166, 16
    %v221 = vpop.permute.xlu0 %220
    %222 = vrot.lane.b32.xlu0 %v167, 16
    %v223 = vpop.permute.xlu0 %222
    %224 = vrot.lane.b32.xlu0 %v168, 16
    %v225 = vpop.permute.xlu0 %224
    %vm226 = vcmp.lt.s32.totalorder %v187, 16
    %v227 = vsel %vm226, %v223, %v225
    %v228 = vsel %vm226, %v221, %v223
    %v229 = vsel %vm226, %v219, %v221
    %v230 = vsel %vm226, %v225, %v219
    %v232 = vlaneseq
    %v233 = vshrl.u32 %v232, 7
    %v234 = vsub.s32 0, %v233
    %v235 = vrot.slane %v170, %v234
    %v236 = vlaneseq
    %v237 = vshrl.u32 %v236, 7
    %v238 = vsub.s32 1, %v237
    %v239 = vrot.slane %v170, %v238
    %v240 = vlaneseq
    %v241 = vshrl.u32 %v240, 7
    %v242 = vsub.s32 2, %v241
    %v243 = vrot.slane %v170, %v242
    %v244 = vlaneseq
    %v245 = vshrl.u32 %v244, 7
    %v246 = vsub.s32 3, %v245
    %v247 = vrot.slane %v170, %v246
    %v252 = vmul.f32 %v230, %v235
    %v253 = vmul.f32 %v229, %v239
    %v254 = vmul.f32 %v228, %v243
    %v255 = vmul.f32 %v227, %v247
    %256 = vrot.lane.b32.xlu0 %v165, 15
    %v257 = vpop.permute.xlu0 %256
    %258 = vrot.lane.b32.xlu0 %v166, 15
    %v259 = vpop.permute.xlu0 %258
    %260 = vrot.lane.b32.xlu0 %v167, 15
    %v261 = vpop.permute.xlu0 %260
    %262 = vrot.lane.b32.xlu0 %v168, 15
    %v263 = vpop.permute.xlu0 %262
    %vm264 = vcmp.lt.s32.totalorder %v187, 15
    %v265 = vsel %vm264, %v261, %v263
    %v266 = vsel %vm264, %v259, %v261
    %v267 = vsel %vm264, %v257, %v259
    %v268 = vsel %vm264, %v263, %v257
    %v270 = vlaneseq
    %v271 = vshrl.u32 %v270, 7
    %v272 = vsub.s32 0, %v271
    %v273 = vrot.slane %v171, %v272
    %v274 = vlaneseq
    %v275 = vshrl.u32 %v274, 7
    %v276 = vsub.s32 1, %v275
    %v277 = vrot.slane %v171, %v276
    %v278 = vlaneseq
    %v279 = vshrl.u32 %v278, 7
    %v280 = vsub.s32 2, %v279
    %v281 = vrot.slane %v171, %v280
    %v282 = vlaneseq
    %v283 = vshrl.u32 %v282, 7
    %v284 = vsub.s32 3, %v283
    %v285 = vrot.slane %v171, %v284
    %v290 = vmul.f32 %v268, %v273
    %v291 = vmul.f32 %v267, %v277
    %v292 = vmul.f32 %v266, %v281
    %v293 = vmul.f32 %v265, %v285
    %294 = vrot.lane.b32.xlu0 %v165, 1
    %v295 = vpop.permute.xlu0 %294
    %296 = vrot.lane.b32.xlu0 %v166, 1
    %v297 = vpop.permute.xlu0 %296
    %298 = vrot.lane.b32.xlu0 %v167, 1
    %v299 = vpop.permute.xlu0 %298
    %300 = vrot.lane.b32.xlu0 %v168, 1
    %v301 = vpop.permute.xlu0 %300
    %vm302 = vcmp.lt.s32.totalorder %v187, 1
    %v303 = vsel %vm302, %v299, %v301
    %v304 = vsel %vm302, %v297, %v299
    %v305 = vsel %vm302, %v295, %v297
    %v306 = vsel %vm302, %v301, %v295
    %v308 = vlaneseq
    %v309 = vshrl.u32 %v308, 7
    %v310 = vsub.s32 0, %v309
    %v311 = vrot.slane %v172, %v310
    %v312 = vlaneseq
    %v313 = vshrl.u32 %v312, 7
    %v314 = vsub.s32 1, %v313
    %v315 = vrot.slane %v172, %v314
    %v316 = vlaneseq
    %v317 = vshrl.u32 %v316, 7
    %v318 = vsub.s32 2, %v317
    %v319 = vrot.slane %v172, %v318
    %v320 = vlaneseq
    %v321 = vshrl.u32 %v320, 7
    %v322 = vsub.s32 3, %v321
    %v323 = vrot.slane %v172, %v322
    %v328 = vmul.f32 %v306, %v311
    %v329 = vmul.f32 %v305, %v315
    %v330 = vmul.f32 %v304, %v319
    %v331 = vmul.f32 %v303, %v323
    %v333 = vlaneseq
    %v334 = vshrl.u32 %v333, 7
    %v335 = vsub.s32 0, %v334
    %v336 = vrot.slane %v173, %v335
    %v337 = vlaneseq
    %v338 = vshrl.u32 %v337, 7
    %v339 = vsub.s32 1, %v338
    %v340 = vrot.slane %v173, %v339
    %v341 = vlaneseq
    %v342 = vshrl.u32 %v341, 7
    %v343 = vsub.s32 2, %v342
    %v344 = vrot.slane %v173, %v343
    %v345 = vlaneseq
    %v346 = vshrl.u32 %v345, 7
    %v347 = vsub.s32 3, %v346
    %v348 = vrot.slane %v173, %v347
    %v353 = vmul.f32 %v165, %v336
    %v354 = vmul.f32 %v166, %v340
    %v355 = vmul.f32 %v167, %v344
    %v356 = vmul.f32 %v168, %v348
    %357 = vrot.lane.b32.xlu0 %v165, 127
    %v358 = vpop.permute.xlu0 %357
    %359 = vrot.lane.b32.xlu0 %v166, 127
    %v360 = vpop.permute.xlu0 %359
    %361 = vrot.lane.b32.xlu0 %v167, 127
    %v362 = vpop.permute.xlu0 %361
    %363 = vrot.lane.b32.xlu0 %v168, 127
    %v364 = vpop.permute.xlu0 %363
    %vm365 = vcmp.lt.s32.totalorder %v187, 127
    %v366 = vsel %vm365, %v362, %v364
    %v367 = vsel %vm365, %v360, %v362
    %v368 = vsel %vm365, %v358, %v360
    %v369 = vsel %vm365, %v364, %v358
    %v371 = vlaneseq
    %v372 = vshrl.u32 %v371, 7
    %v373 = vsub.s32 0, %v372
    %v374 = vrot.slane %v174, %v373
    %v375 = vlaneseq
    %v376 = vshrl.u32 %v375, 7
    %v377 = vsub.s32 1, %v376
    %v378 = vrot.slane %v174, %v377
    %v379 = vlaneseq
    %v380 = vshrl.u32 %v379, 7
    %v381 = vsub.s32 2, %v380
    %v382 = vrot.slane %v174, %v381
    %v383 = vlaneseq
    %v384 = vshrl.u32 %v383, 7
    %v385 = vsub.s32 3, %v384
    %v386 = vrot.slane %v174, %v385
    %v391 = vmul.f32 %v368, %v374
    %v392 = vmul.f32 %v367, %v378
    %v393 = vmul.f32 %v366, %v382
    %v394 = vmul.f32 %v369, %v386
    %395 = vrot.lane.b32.xlu0 %v165, 113
    %v396 = vpop.permute.xlu0 %395
    %397 = vrot.lane.b32.xlu0 %v166, 113
    %v398 = vpop.permute.xlu0 %397
    %399 = vrot.lane.b32.xlu0 %v167, 113
    %v400 = vpop.permute.xlu0 %399
    %401 = vrot.lane.b32.xlu0 %v168, 113
    %v402 = vpop.permute.xlu0 %401
    %vm403 = vcmp.lt.s32.totalorder %v187, 113
    %v404 = vsel %vm403, %v400, %v402
    %v405 = vsel %vm403, %v398, %v400
    %v406 = vsel %vm403, %v396, %v398
    %v407 = vsel %vm403, %v402, %v396
    %v409 = vlaneseq
    %v410 = vshrl.u32 %v409, 7
    %v411 = vsub.s32 0, %v410
    %v412 = vrot.slane %v175, %v411
    %v413 = vlaneseq
    %v414 = vshrl.u32 %v413, 7
    %v415 = vsub.s32 1, %v414
    %v416 = vrot.slane %v175, %v415
    %v417 = vlaneseq
    %v418 = vshrl.u32 %v417, 7
    %v419 = vsub.s32 2, %v418
    %v420 = vrot.slane %v175, %v419
    %v421 = vlaneseq
    %v422 = vshrl.u32 %v421, 7
    %v423 = vsub.s32 3, %v422
    %v424 = vrot.slane %v175, %v423
    %v429 = vmul.f32 %v406, %v412
    %v430 = vmul.f32 %v405, %v416
    %v431 = vmul.f32 %v404, %v420
    %v432 = vmul.f32 %v407, %v424
    %433 = vrot.lane.b32.xlu0 %v165, 112
    %v434 = vpop.permute.xlu0 %433
    %435 = vrot.lane.b32.xlu0 %v166, 112
    %v436 = vpop.permute.xlu0 %435
    %437 = vrot.lane.b32.xlu0 %v167, 112
    %v438 = vpop.permute.xlu0 %437
    %439 = vrot.lane.b32.xlu0 %v168, 112
    %v440 = vpop.permute.xlu0 %439
    %vm441 = vcmp.lt.s32.totalorder %v187, 112
    %v442 = vsel %vm441, %v438, %v440
    %v443 = vsel %vm441, %v436, %v438
    %v444 = vsel %vm441, %v434, %v436
    %v445 = vsel %vm441, %v440, %v434
    %v447 = vlaneseq
    %v448 = vshrl.u32 %v447, 7
    %v449 = vsub.s32 0, %v448
    %v450 = vrot.slane %v176, %v449
    %v451 = vlaneseq
    %v452 = vshrl.u32 %v451, 7
    %v453 = vsub.s32 1, %v452
    %v454 = vrot.slane %v176, %v453
    %v455 = vlaneseq
    %v456 = vshrl.u32 %v455, 7
    %v457 = vsub.s32 2, %v456
    %v458 = vrot.slane %v176, %v457
    %v459 = vlaneseq
    %v460 = vshrl.u32 %v459, 7
    %v461 = vsub.s32 3, %v460
    %v462 = vrot.slane %v176, %v461
    %v467 = vmul.f32 %v444, %v450
    %v468 = vmul.f32 %v443, %v454
    %v469 = vmul.f32 %v442, %v458
    %v470 = vmul.f32 %v445, %v462
    %471 = vrot.lane.b32.xlu0 %v165, 111
    %v472 = vpop.permute.xlu0 %471
    %473 = vrot.lane.b32.xlu0 %v166, 111
    %v474 = vpop.permute.xlu0 %473
    %475 = vrot.lane.b32.xlu0 %v167, 111
    %v476 = vpop.permute.xlu0 %475
    %477 = vrot.lane.b32.xlu0 %v168, 111
    %v478 = vpop.permute.xlu0 %477
    %vm479 = vcmp.lt.s32.totalorder %v187, 111
    %v480 = vsel %vm479, %v476, %v478
    %v481 = vsel %vm479, %v474, %v476
    %v482 = vsel %vm479, %v472, %v474
    %v483 = vsel %vm479, %v478, %v472
    %v485 = vlaneseq
    %v486 = vshrl.u32 %v485, 7
    %v487 = vsub.s32 0, %v486
    %v488 = vrot.slane %v177, %v487
    %v489 = vlaneseq
    %v490 = vshrl.u32 %v489, 7
    %v491 = vsub.s32 1, %v490
    %v492 = vrot.slane %v177, %v491
    %v493 = vlaneseq
    %v494 = vshrl.u32 %v493, 7
    %v495 = vsub.s32 2, %v494
    %v496 = vrot.slane %v177, %v495
    %v497 = vlaneseq
    %v498 = vshrl.u32 %v497, 7
    %v499 = vsub.s32 3, %v498
    %v500 = vrot.slane %v177, %v499
    %v505 = vmul.f32 %v482, %v488
    %v506 = vmul.f32 %v481, %v492
    %v507 = vmul.f32 %v480, %v496
    %v508 = vmul.f32 %v483, %v500
    %v509 = vld [vmem:[%s3] sm:$0xf]
    %v510 = vpack.c.bf16 %v252, %v214
    %v511 = vpack.c.bf16 %v253, %v215
    %v512 = vpack.c.bf16 %v254, %v216
    %v513 = vpack.c.bf16 %v255, %v217
    %v514 = vpack.c.bf16 %v328, %v290
    %v515 = vpack.c.bf16 %v329, %v291
    %v516 = vpack.c.bf16 %v330, %v292
    %v517 = vpack.c.bf16 %v331, %v293
    %v518 = vpack.c.bf16 %v391, %v353
    %v519 = vpack.c.bf16 %v392, %v354
    %v520 = vpack.c.bf16 %v393, %v355
    %v521 = vpack.c.bf16 %v394, %v356
    %v522 = vpack.c.bf16 %v467, %v429
    %v523 = vpack.c.bf16 %v468, %v430
    %v524 = vpack.c.bf16 %v469, %v431
    %v525 = vpack.c.bf16 %v470, %v432
    %v526 = vpack.c.bf16 %v505, %v505
    %v527 = vpack.c.bf16 %v506, %v506
    %v528 = vpack.c.bf16 %v507, %v507
    %v529 = vpack.c.bf16 %v508, %v508
    %v530 = vld [vmem:[%s6] sm:$0xff]
    %532 = vset.pattern.permute.xlu0 0
    %533 = vperm.xlu0 %532, %v530
    %v534 = vpop.permute.xlu0 %533
    %vm536 = vcmask 588800
    %v538 = vsel %vm536, %v509, 0
    %vm540 = vcmask 1043456
    %v542 = vsel %vm540, %v526, 0
    %v545 = vsel %vm540, %v527, 0
    %v548 = vsel %vm540, %v528, 0
    %v551 = vsel %vm540, %v529, 0
    %553 = vmatprep.subr.bf16.mxu0 %v511
    %554 = vmatpush1.bf16.msra.mxu0 %v510
    %555 = vmatprep.subr.bf16.mxu0 %v515
    %556 = vmatpush1.bf16.msra.mxu0 %v514
    %557 = vmatprep.subr.bf16.mxu0 %v519
    %558 = vmatpush1.bf16.msra.mxu0 %v518
    %559 = vmatprep.subr.bf16.mxu0 %v523
    %560 = vmatpush1.bf16.msra.mxu0 %v522
    %561 = vmatprep.subr.bf16.mxu0 %v545
    %562 = vmatpush1.bf16.msra.mxu0 %v542
    %563 = vmatprep.subr.bf16.mxu0 0
    %564 = vmatpush1.bf16.msra.mxu0 0
    %565 = vmatprep.subr.bf16.mxu0 0
    %566 = vmatpush1.bf16.msra.mxu0 0
    %567 = vmatprep.subr.bf16.mxu0 0
    %568 = vmatpush1.bf16.msra.mxu0 0
    %569 = vmatprep.subr.bf16.mxu0 0
    %570 = vmatpush1.bf16.msra.mxu0 0
    %571 = vmatprep.subr.bf16.mxu0 0
    %572 = vmatpush1.bf16.msra.mxu0 0
    %573 = vmatprep.subr.bf16.mxu0 0
    %574 = vmatpush1.bf16.msra.mxu0 0
    %575 = vmatprep.subr.bf16.mxu0 0
    %576 = vmatpush1.bf16.msra.mxu0 0
    %577 = vmatprep.subr.bf16.mxu0 0
    %578 = vmatpush1.bf16.msra.mxu0 0
    %579 = vmatprep.subr.bf16.mxu0 0
    %580 = vmatpush1.bf16.msra.mxu0 0
    %581 = vmatprep.subr.bf16.mxu0 0
    %582 = vmatpush1.bf16.msra.mxu0 0
    %583 = vmatprep.subr.bf16.mxu0 0
    %584 = vmatpush1.bf16.msra.mxu0 0
    %585 = vmatprep.mubr.bf16.mxu0 0
    %586 = vmatmul.mubr.bf16.gmra.mrb[0].mxu0 %v538
    %v587 = vpop.f32.mrb[0].mxu0
    %v588 = vadd.f32 %v534, %v587
    %v589 = vpop.f32.mrb[0].mxu0
    %v590 = vadd.f32 %v534, %v589
    %v591 = vpop.f32.mrb[0].mxu0
    %v592 = vpop.f32.mrb[0].mxu0
    %593 = vdwg.mxu0
    %594 = vmatprep.subr.bf16.mxu0 %v513
    %595 = vmatpush1.bf16.msra.mxu0 %v512
    %596 = vmatprep.subr.bf16.mxu0 %v517
    %597 = vmatpush1.bf16.msra.mxu0 %v516
    %598 = vmatprep.subr.bf16.mxu0 %v521
    %599 = vmatpush1.bf16.msra.mxu0 %v520
    %600 = vmatprep.subr.bf16.mxu0 %v525
    %601 = vmatpush1.bf16.msra.mxu0 %v524
    %602 = vmatprep.subr.bf16.mxu0 %v551
    %603 = vmatpush1.bf16.msra.mxu0 %v548
    %604 = vmatprep.subr.bf16.mxu0 0
    %605 = vmatpush1.bf16.msra.mxu0 0
    %606 = vmatprep.subr.bf16.mxu0 0
    %607 = vmatpush1.bf16.msra.mxu0 0
    %608 = vmatprep.subr.bf16.mxu0 0
    %609 = vmatpush1.bf16.msra.mxu0 0
    %610 = vmatprep.subr.bf16.mxu0 0
    %611 = vmatpush1.bf16.msra.mxu0 0
    %612 = vmatprep.subr.bf16.mxu0 0
    %613 = vmatpush1.bf16.msra.mxu0 0
    %614 = vmatprep.subr.bf16.mxu0 0
    %615 = vmatpush1.bf16.msra.mxu0 0
    %616 = vmatprep.subr.bf16.mxu0 0
    %617 = vmatpush1.bf16.msra.mxu0 0
    %618 = vmatprep.subr.bf16.mxu0 0
    %619 = vmatpush1.bf16.msra.mxu0 0
    %620 = vmatprep.subr.bf16.mxu0 0
    %621 = vmatpush1.bf16.msra.mxu0 0
    %622 = vmatprep.subr.bf16.mxu0 0
    %623 = vmatpush1.bf16.msra.mxu0 0
    %624 = vmatprep.subr.bf16.mxu0 0
    %625 = vmatpush1.bf16.msra.mxu0 0
    %626 = vmatprep.mubr.bf16.mxu0 0
    %627 = vmatmul.mubr.bf16.gmra.mrb[0].mxu0 %v538
    %v628 = vpop.f32.mrb[0].mxu0
    %v629 = vadd.f32 %v534, %v628
    %v630 = vpop.f32.mrb[0].mxu0
    %v631 = vadd.f32 %v534, %v630
    %v632 = vpop.f32.mrb[0].mxu0
    %v633 = vpop.f32.mrb[0].mxu0
    %634 = vdwg.mxu0
    %v635 = vmax.f32 %v588, 0.0
    %v636 = vmax.f32 %v590, 0.0
    %v637 = vmax.f32 %v629, 0.0
    %v638 = vmax.f32 %v631, 0.0
    %v639 = vld [vmem:[%s4] sm:$0xf]
    %v640 = vld [vmem:[%s4 + $0x4] sm:$0xf]
    %v641 = vld [vmem:[%s4 + $0x8] sm:$0xf]
    %v642 = vld [vmem:[%s4 + $0xc] sm:$0xf]
    %v643 = vpack.c.bf16 %v635, %v635
    %v644 = vpack.c.bf16 %v636, %v636
    %v645 = vpack.c.bf16 %v637, %v637
    %v646 = vpack.c.bf16 %v638, %v638
    %v647 = vld [vmem:[%s7] sm:$0xff]
    %v648 = vld [vmem:[%s7 + $0x8] sm:$0xff]
    %v649 = vld [vmem:[%s7 + $0x10] sm:$0xff]
    %v650 = vld [vmem:[%s7 + $0x18] sm:$0xff]
    %652 = vset.pattern.permute.xlu0 0
    %653 = vperm.xlu0 %652, %v647
    %v654 = vpop.permute.xlu0 %653
    %657 = vset.pattern.permute.xlu0 0
    %658 = vperm.xlu0 %657, %v648
    %v659 = vpop.permute.xlu0 %658
    %662 = vset.pattern.permute.xlu0 0
    %663 = vperm.xlu0 %662, %v649
    %v664 = vpop.permute.xlu0 %663
    %667 = vset.pattern.permute.xlu0 0
    %668 = vperm.xlu0 %667, %v650
    %v669 = vpop.permute.xlu0 %668
    %v675 = vunpack.c.l.b16 %v639
    %v676 = vunpack.c.l.b16 %v640
    %v677 = vunpack.c.l.b16 %v641
    %v678 = vunpack.c.l.b16 %v642
    %v679 = vpack.c.b16 %v676, %v675
    %v680 = vpack.c.b16 %v678, %v677
    %vm681 = vcmask 64512
    %v683 = vsel %vm681, %v679, 0
    %v686 = vsel %vm681, %v680, 0
    %v689 = vsel %vm540, %v643, 0
    %v692 = vsel %vm540, %v644, 0
    %v695 = vsel %vm540, %v645, 0
    %v698 = vsel %vm540, %v646, 0
    %700 = vmatprep.subr.bf16.mxu0 %v692
    %701 = vmatpush1.bf16.msra.mxu0 %v689
    %702 = vmatprep.subr.bf16.mxu0 0
    %703 = vmatpush1.bf16.msra.mxu0 0
    %704 = vmatprep.subr.bf16.mxu0 0
    %705 = vmatpush1.bf16.msra.mxu0 0
    %706 = vmatprep.subr.bf16.mxu0 0
    %707 = vmatpush1.bf16.msra.mxu0 0
    %708 = vmatprep.subr.bf16.mxu0 0
    %709 = vmatpush1.bf16.msra.mxu0 0
    %710 = vmatprep.subr.bf16.mxu0 0
    %711 = vmatpush1.bf16.msra.mxu0 0
    %712 = vmatprep.subr.bf16.mxu0 0
    %713 = vmatpush1.bf16.msra.mxu0 0
    %714 = vmatprep.subr.bf16.mxu0 0
    %715 = vmatpush1.bf16.msra.mxu0 0
    %716 = vmatprep.subr.bf16.mxu0 0
    %717 = vmatpush1.bf16.msra.mxu0 0
    %718 = vmatprep.subr.bf16.mxu0 0
    %719 = vmatpush1.bf16.msra.mxu0 0
    %720 = vmatprep.subr.bf16.mxu0 0
    %721 = vmatpush1.bf16.msra.mxu0 0
    %722 = vmatprep.subr.bf16.mxu0 0
    %723 = vmatpush1.bf16.msra.mxu0 0
    %724 = vmatprep.subr.bf16.mxu0 0
    %725 = vmatpush1.bf16.msra.mxu0 0
    %726 = vmatprep.subr.bf16.mxu0 0
    %727 = vmatpush1.bf16.msra.mxu0 0
    %728 = vmatprep.subr.bf16.mxu0 0
    %729 = vmatpush1.bf16.msra.mxu0 0
    %730 = vmatprep.subr.bf16.mxu0 0
    %731 = vmatpush1.bf16.msra.mxu0 0
    %732 = vmatprep.mubr.bf16.mxu0 0
    %733 = vmatmul.mubr.bf16.gmra.mrb[0].mxu0 %v683
    %v734 = vpop.f32.mrb[0].mxu0
    %v735 = vadd.f32 %v654, %v734
    %v736 = vpop.f32.mrb[0].mxu0
    %v737 = vadd.f32 %v654, %v736
    %v738 = vpop.f32.mrb[0].mxu0
    %v739 = vadd.f32 %v659, %v738
    %v740 = vpop.f32.mrb[0].mxu0
    %v741 = vadd.f32 %v659, %v740
    %742 = vmatprep.mubr.bf16.mxu0 0
    %743 = vmatmul.mubr.bf16.gmra.mrb[0].mxu0 %v686
    %v744 = vpop.f32.mrb[0].mxu0
    %v745 = vadd.f32 %v664, %v744
    %v746 = vpop.f32.mrb[0].mxu0
    %v747 = vadd.f32 %v664, %v746
    %v748 = vpop.f32.mrb[0].mxu0
    %v749 = vadd.f32 %v669, %v748
    %v750 = vpop.f32.mrb[0].mxu0
    %v751 = vadd.f32 %v669, %v750
    %752 = vdwg.mxu0
    %753 = vmatprep.subr.bf16.mxu0 %v698
    %754 = vmatpush1.bf16.msra.mxu0 %v695
    %755 = vmatprep.subr.bf16.mxu0 0
    %756 = vmatpush1.bf16.msra.mxu0 0
    %757 = vmatprep.subr.bf16.mxu0 0
    %758 = vmatpush1.bf16.msra.mxu0 0
    %759 = vmatprep.subr.bf16.mxu0 0
    %760 = vmatpush1.bf16.msra.mxu0 0
    %761 = vmatprep.subr.bf16.mxu0 0
    %762 = vmatpush1.bf16.msra.mxu0 0
    %763 = vmatprep.subr.bf16.mxu0 0
    %764 = vmatpush1.bf16.msra.mxu0 0
    %765 = vmatprep.subr.bf16.mxu0 0
    %766 = vmatpush1.bf16.msra.mxu0 0
    %767 = vmatprep.subr.bf16.mxu0 0
    %768 = vmatpush1.bf16.msra.mxu0 0
    %769 = vmatprep.subr.bf16.mxu0 0
    %770 = vmatpush1.bf16.msra.mxu0 0
    %771 = vmatprep.subr.bf16.mxu0 0
    %772 = vmatpush1.bf16.msra.mxu0 0
    %773 = vmatprep.subr.bf16.mxu0 0
    %774 = vmatpush1.bf16.msra.mxu0 0
    %775 = vmatprep.subr.bf16.mxu0 0
    %776 = vmatpush1.bf16.msra.mxu0 0
    %777 = vmatprep.subr.bf16.mxu0 0
    %778 = vmatpush1.bf16.msra.mxu0 0
    %779 = vmatprep.subr.bf16.mxu0 0
    %780 = vmatpush1.bf16.msra.mxu0 0
    %781 = vmatprep.subr.bf16.mxu0 0
    %782 = vmatpush1.bf16.msra.mxu0 0
    %783 = vmatprep.subr.bf16.mxu0 0
    %784 = vmatpush1.bf16.msra.mxu0 0
    %785 = vmatprep.mubr.bf16.mxu0 0
    %786 = vmatmul.mubr.bf16.gmra.mrb[0].mxu0 %v683
    %v787 = vpop.f32.mrb[0].mxu0
    %v788 = vadd.f32 %v654, %v787
    %v789 = vpop.f32.mrb[0].mxu0
    %v790 = vadd.f32 %v654, %v789
    %v791 = vpop.f32.mrb[0].mxu0
    %v792 = vadd.f32 %v659, %v791
    %v793 = vpop.f32.mrb[0].mxu0
    %v794 = vadd.f32 %v659, %v793
    %795 = vmatprep.mubr.bf16.mxu0 0
    %796 = vmatmul.mubr.bf16.gmra.mrb[0].mxu0 %v686
    %v797 = vpop.f32.mrb[0].mxu0
    %v798 = vadd.f32 %v664, %v797
    %v799 = vpop.f32.mrb[0].mxu0
    %v800 = vadd.f32 %v664, %v799
    %v801 = vpop.f32.mrb[0].mxu0
    %v802 = vadd.f32 %v669, %v801
    %v803 = vpop.f32.mrb[0].mxu0
    %v804 = vadd.f32 %v669, %v803
    %805 = vdwg.mxu0
    %v806 = vmax.f32 %v735, 0.0
    %v807 = vmax.f32 %v737, 0.0
    %v808 = vmax.f32 %v788, 0.0
    %v809 = vmax.f32 %v790, 0.0
    %v810 = vmax.f32 %v739, 0.0
    %v811 = vmax.f32 %v741, 0.0
    %v812 = vmax.f32 %v792, 0.0
    %v813 = vmax.f32 %v794, 0.0
    %v814 = vmax.f32 %v745, 0.0
    %v815 = vmax.f32 %v747, 0.0
    %v816 = vmax.f32 %v798, 0.0
    %v817 = vmax.f32 %v800, 0.0
    %v818 = vmax.f32 %v749, 0.0
    %v819 = vmax.f32 %v751, 0.0
    %v820 = vmax.f32 %v802, 0.0
    %v821 = vmax.f32 %v804, 0.0
    %v822 = vadd.f32 %v806, %v48
    %v823 = vadd.f32 %v807, %v49
    %v824 = vadd.f32 %v808, %v50
    %v825 = vadd.f32 %v809, %v51
    %v826 = vadd.f32 %v810, %v52
    %v827 = vadd.f32 %v811, %v53
    %v828 = vadd.f32 %v812, %v54
    %v829 = vadd.f32 %v813, %v55
    %v830 = vadd.f32 %v814, %v56
    %v831 = vadd.f32 %v815, %v57
    %v832 = vadd.f32 %v816, %v58
    %v833 = vadd.f32 %v817, %v59
    %v834 = vadd.f32 %v818, %v60
    %v835 = vadd.f32 %v819, %v61
    %v836 = vadd.f32 %v820, %v62
    %v837 = vadd.f32 %v821, %v63
    %838 = vst [vmem:[#allocation6] sm:$0xff] %v822
    %839 = vst [vmem:[#allocation6 + $0x8] sm:$0xff] %v823
    %840 = vst [vmem:[#allocation6 + $0x10] sm:$0xff] %v824
    %841 = vst [vmem:[#allocation6 + $0x18] sm:$0xff] %v825
    %842 = vst [vmem:[#allocation6 + $0x20] sm:$0xff] %v826
    %843 = vst [vmem:[#allocation6 + $0x28] sm:$0xff] %v827
    %844 = vst [vmem:[#allocation6 + $0x30] sm:$0xff] %v828
    %845 = vst [vmem:[#allocation6 + $0x38] sm:$0xff] %v829
    %846 = vst [vmem:[#allocation6 + $0x40] sm:$0xff] %v830
    %847 = vst [vmem:[#allocation6 + $0x48] sm:$0xff] %v831
    %848 = vst [vmem:[#allocation6 + $0x50] sm:$0xff] %v832
    %849 = vst [vmem:[#allocation6 + $0x58] sm:$0xff] %v833
    %850 = vst [vmem:[#allocation6 + $0x60] sm:$0xff] %v834
    %851 = vst [vmem:[#allocation6 + $0x68] sm:$0xff] %v835
    %852 = vst [vmem:[#allocation6 + $0x70] sm:$0xff] %v836
    %853 = vst [vmem:[#allocation6 + $0x78] sm:$0xff] %v837
    %v854 = vmax.f32 %v822, 0.0
    %v855 = vmax.f32 %v823, 0.0
    %v856 = vmax.f32 %v824, 0.0
    %v857 = vmax.f32 %v825, 0.0
    %v858 = vmax.f32 %v826, 0.0
    %v859 = vmax.f32 %v827, 0.0
    %v860 = vmax.f32 %v828, 0.0
    %v861 = vmax.f32 %v829, 0.0
    %v862 = vmax.f32 %v830, 0.0
    %v863 = vmax.f32 %v831, 0.0
    %v864 = vmax.f32 %v832, 0.0
    %v865 = vmax.f32 %v833, 0.0
    %v866 = vmax.f32 %v834, 0.0
    %v867 = vmax.f32 %v835, 0.0
    %v868 = vmax.f32 %v836, 0.0
    %v869 = vmax.f32 %v837, 0.0
    %870 = vst [vmem:[#allocation5] sm:$0xff] %v854
    %871 = vst [vmem:[#allocation5 + $0x8] sm:$0xff] %v855
    %872 = vst [vmem:[#allocation5 + $0x10] sm:$0xff] %v856
    %873 = vst [vmem:[#allocation5 + $0x18] sm:$0xff] %v857
    %874 = vst [vmem:[#allocation5 + $0x20] sm:$0xff] %v858
    %875 = vst [vmem:[#allocation5 + $0x28] sm:$0xff] %v859
    %876 = vst [vmem:[#allocation5 + $0x30] sm:$0xff] %v860
    %877 = vst [vmem:[#allocation5 + $0x38] sm:$0xff] %v861
    %878 = vst [vmem:[#allocation5 + $0x40] sm:$0xff] %v862
    %879 = vst [vmem:[#allocation5 + $0x48] sm:$0xff] %v863
    %880 = vst [vmem:[#allocation5 + $0x50] sm:$0xff] %v864
    %881 = vst [vmem:[#allocation5 + $0x58] sm:$0xff] %v865
    %882 = vst [vmem:[#allocation5 + $0x60] sm:$0xff] %v866
    %883 = vst [vmem:[#allocation5 + $0x68] sm:$0xff] %v867
    %884 = vst [vmem:[#allocation5 + $0x70] sm:$0xff] %v868
    %885 = vst [vmem:[#allocation5 + $0x78] sm:$0xff] %v869
    // Predicated region
    $region38: #{tpu_custom_call.1} parent=1 // pred_check
      _
    $region39: #{tpu_custom_call.1} parent=1 // pred_check_branch
      %887 = sbr.rel (0) target = $region41
    $region40: #{tpu_custom_call.1} parent=1 // pred_region
      %s889 = ssub.s32 2048, 2048
      %890 = vsyncadd [#allocation4], %s889
      %s891 = sshll.u32 [#allocation5], 4
      %s892 = int_to_ptr.vmem [resolvable:$true] %s891
      %897 = dma.vmem_to_hbm [thread:$0]  %s892, 2048, %s8, [#allocation4], 512, 512, 32
    $region41: #{tpu_custom_call.1} parent=1 // pred_fallthru
      _
    // Predicated region
    $region42: #{tpu_custom_call.1} parent=1 // pred_check
      _
    $region43: #{tpu_custom_call.1} parent=1 // pred_check_branch
      %899 = sbr.rel (0) target = $region45
    $region44: #{tpu_custom_call.1} parent=1 // pred_region
      %s901 = ssub.s32 2048, 2048
      %902 = vsyncadd [#allocation7], %s901
      %s903 = sshll.u32 [#allocation6], 4
      %s904 = int_to_ptr.vmem [resolvable:$true] %s903
      %909 = dma.vmem_to_hbm [thread:$0]  %s904, 2048, %s9, [#allocation7], 512, 512, 32
    $region45: #{tpu_custom_call.1} parent=1 // pred_fallthru
      _
    // Predicated region
    $region46: #{tpu_custom_call.1} parent=1 // pred_check
      _
    $region47: #{tpu_custom_call.1} parent=1 // pred_check_branch
      %911 = sbr.rel (0) target = $region49
    $region48: #{tpu_custom_call.1} parent=1 // pred_region
      %912 = dma.done [#allocation4], 2048
    $region49: #{tpu_custom_call.1} parent=1 // pred_fallthru
      _
    // Predicated region
    $region50: #{tpu_custom_call.1} parent=1 // pred_check
      _
    $region51: #{tpu_custom_call.1} parent=1 // pred_check_branch
      %914 = sbr.rel (0) target = $region53
    $region52: #{tpu_custom_call.1} parent=1 // pred_region
      %915 = dma.done [#allocation7], 2048
    $region53: #{tpu_custom_call.1} parent=1 // pred_fallthru
      _
    %916 = vsyncpa [#allocation3], 1
    %917 = vsyncpa [#allocation4], 1
    %918 = vsyncpa [#allocation7], 1

</llo_original>
